<compile_context>
chip_gen: v6e
topology: v6e:2x2x1
jax: 0.10.0
libtpu: 0.0.40
codegen_flags: <defaults>
</compile_context>

<pallas_src>
import functools

import jax
import jax.numpy as jnp
from jax.experimental import pallas as pl
from jax.experimental.pallas import tpu as pltpu

_LANE = 128


def _round_up(x, m):
    return ((x + m - 1) // m) * m


def _pad2d(a, rows, cols):
    return jnp.pad(a, ((0, rows - a.shape[0]), (0, cols - a.shape[1])))


def _vmem_limit_bytes():
    """Scoped-VMEM limit derived from the local chip (v7x-safe fallback)."""
    try:
        phys = pltpu.get_tpu_info().vmem_capacity_bytes
    except Exception:  # interpret mode / older runtimes
        phys = 64 << 20  # assume the smallest (v7x per-TensorCore) VMEM
    return min(int(phys * 0.8), 100 << 20)


def _pick_row_tile(n_pad, layer_dims, budget_bytes, max_tile=512):
    """Largest row tile (multiple of 8, dividing n_pad) whose worst-case
    per-layer VMEM estimate (default double-buffering) fits `budget_bytes`."""

    def vmem_needed(tm):
        worst = 0
        for din_p, dout_p, out_itemsize in layer_dims:
            est = (2 * tm * n_pad * 2                 # A row tile (bf16), 2 bufs
                   + 2 * n_pad * din_p * 2            # resident H (bf16), 2 bufs
                   + 2 * 2 * din_p * dout_p * 2       # stacked [W_l; W_r] (bf16)
                   + 2 * 8 * dout_p * 4               # bias (sublane-padded f32)
                   + 2 * tm * dout_p * out_itemsize   # output tile, 2 bufs
                   + tm * (4 * din_p + 4 * din_p + 4 * dout_p))  # temporaries
            worst = max(worst, est)
        return worst

    # n_pad is a multiple of 128, so tm = 8 always divides it (guaranteed exit).
    tm = min(max_tile, n_pad)
    tm -= tm % 8
    while tm > 8 and (n_pad % tm != 0 or vmem_needed(tm) > budget_bytes):
        tm -= 8
    return max(tm, 8)


def _sage_layer_kernel(a_ref, h_ref, w_ref, b_ref, o_ref, *, tm, apply_relu):
    """One SAGEConv layer for one row tile:
         o_tile = concat([A_tile @ H, H_tile]) @ [W_l; W_r] + b   (+ ReLU)
       All MXU operands are bf16; accumulation is f32."""
    row0 = pl.multiple_of(pl.program_id(0) * tm, tm)

    # Mean-aggregated neighbour features for this row tile (MXU, f32 acc).
    agg = jnp.dot(a_ref[...], h_ref[...], preferred_element_type=jnp.float32)
    root = h_ref[pl.ds(row0, tm), :]

    # Single K = 2*din_p MXU pass through the stacked [W_l; W_r] weights.
    lhs = jnp.concatenate([agg.astype(h_ref.dtype), root], axis=-1)
    y = jnp.dot(lhs, w_ref[...], preferred_element_type=jnp.float32) + b_ref[...]
    if apply_relu:
        y = jnp.maximum(y, 0.0)
    o_ref[...] = y.astype(o_ref.dtype)


def _sage_layer(a, h, w, b, *, n_pad, din_p, dout_p, tm, apply_relu,
                out_dtype, vmem_limit):
    num_tiles = n_pad // tm
    kernel = functools.partial(_sage_layer_kernel, tm=tm, apply_relu=apply_relu)
    return pl.pallas_call(
        kernel,
        out_shape=jax.ShapeDtypeStruct((n_pad, dout_p), out_dtype),
        grid=(num_tiles,),
        in_specs=[
            pl.BlockSpec((tm, n_pad), lambda i: (i, 0)),           # A row tile
            pl.BlockSpec((n_pad, din_p), lambda i: (0, 0)),        # H (resident)
            pl.BlockSpec((2 * din_p, dout_p), lambda i: (0, 0)),   # [W_l; W_r]
            pl.BlockSpec((1, dout_p), lambda i: (0, 0)),           # bias
        ],
        out_specs=pl.BlockSpec((tm, dout_p), lambda i: (i, 0)),
        compiler_params=pltpu.CompilerParams(
            # No cross-tile dependency: shardable across TensorCores (v7x).
            dimension_semantics=("parallel",),
            vmem_limit_bytes=vmem_limit,
        ),
    )(a, h, w, b)


def pack_params(params):
    """Pad weights/bias to lane-dense widths, cast MXU operands to bf16 and
    stack [W_l; W_r] per layer so each layer is a single K=2*din MXU pass."""
    layers = []
    for w_l, w_r, b in params:
        din, dout = w_l.shape
        din_p = _round_up(din, _LANE)
        dout_p = _round_up(dout, _LANE)
        w = jnp.concatenate(
            [_pad2d(w_l, din_p, dout_p), _pad2d(w_r, din_p, dout_p)],
            axis=0).astype(jnp.bfloat16)
        layers.append(dict(
            w=w,
            b=_pad2d(b.reshape(1, -1), 1, dout_p).astype(jnp.float32),
            din=din, dout=dout, din_p=din_p, dout_p=dout_p))
    return layers


def build_mean_adjacency(edge_indices, num_nodes, num_nodes_padded):
    """Row-normalized dense adjacency (bf16): A[i, j] = 1/in_deg(i), edge j->i."""
    src = edge_indices[0]
    dst = edge_indices[1]
    adj = jnp.zeros((num_nodes_padded, num_nodes_padded), jnp.float32)
    adj = adj.at[dst, src].add(1.0)
    deg = adj.sum(axis=1, keepdims=True)
    return (adj / jnp.maximum(deg, 1.0)).astype(jnp.bfloat16)


def graphsage_forward(node_features, edge_indices, layers):
    """Mirror of GraphSAGEModelV1.forward (eval mode)."""
    n, fin = node_features.shape
    assert fin == layers[0]["din"]
    n_pad = _round_up(n, _LANE)  # lane-dense A / contraction dim

    a = build_mean_adjacency(edge_indices, n, n_pad)
    h = _pad2d(node_features.astype(jnp.float32),
               n_pad, layers[0]["din_p"]).astype(jnp.bfloat16)

    vmem_limit = _vmem_limit_bytes()
    layer_dims = [(lyr["din_p"], lyr["dout_p"],
                   4 if i == len(layers) - 1 else 2)
                  for i, lyr in enumerate(layers)]
    tm = _pick_row_tile(n_pad, layer_dims, int(vmem_limit * 0.8))

    for i, layer in enumerate(layers):
        last = i == len(layers) - 1
        h = _sage_layer(
            a, h, layer["w"], layer["b"],
            n_pad=n_pad, din_p=layer["din_p"], dout_p=layer["dout_p"],
            tm=tm, apply_relu=not last,
            out_dtype=jnp.float32 if last else jnp.bfloat16,
            vmem_limit=vmem_limit)
        # TODO(synk): nn.Dropout(0.5) after each hidden layer is identity in
        # eval mode; a training-mode kernel would mask/scale h here using
        # pltpu.prng_seed / pltpu.prng_random_bits.
    return h[:n, :layers[-1]["dout"]]


def init_params(key, input_dim, hidden_dim, output_dim, num_layers=2):
    """Deterministic synthetic parameters. Each SAGEConv has:
       lin_l: [in, out] weight + bias (aggregated path)
       lin_r: [in, out] weight, no bias (root path)
    """
    dims = [input_dim] + [hidden_dim] * (num_layers - 1) + [output_dim]
    params = []
    for i in range(num_layers):
        din, dout = dims[i], dims[i + 1]
        key, k1, k2 = jax.random.split(key, 3)
        scale = 1.0 / jnp.sqrt(jnp.float32(din))
        w_l = jax.random.normal(k1, (din, dout), jnp.float32) * scale
        w_r = jax.random.normal(k2, (din, dout), jnp.float32) * scale
        b = jnp.zeros((dout,), jnp.float32)
        params.append((w_l, w_r, b))
    return params


if __name__ == "__main__":
    key = jax.random.PRNGKey(0)

    num_nodes = 64
    input_dim = 16
    hidden_dim = 32
    output_dim = 8
    num_edges = 128

    key, kx, ke = jax.random.split(key, 3)
    node_features = jax.random.normal(kx, (num_nodes, input_dim), jnp.float32)
    edge_indices = jax.random.randint(ke, (2, num_edges), 0, num_nodes, jnp.int32)

    params = init_params(key, input_dim, hidden_dim, output_dim, num_layers=2)
    packed = pack_params(params)

    out = graphsage_forward(node_features, edge_indices, packed)
    out = jax.block_until_ready(out)

    assert out.shape == (num_nodes, output_dim), out.shape
    assert out.dtype == jnp.float32

    # Pure-JAX f32 reference (module semantics). The kernel uses bf16 MXU
    # operands with f32 accumulation, so tolerance is loosened accordingly.
    a_ref = jnp.zeros((num_nodes, num_nodes), jnp.float32)
    a_ref = a_ref.at[edge_indices[1], edge_indices[0]].add(1.0)
    a_ref = a_ref / jnp.maximum(a_ref.sum(axis=1, keepdims=True), 1.0)
    x_ref = node_features
    for i, (w_l, w_r, b) in enumerate(params):
        x_ref = (a_ref @ x_ref) @ w_l + x_ref @ w_r + b
        if i != len(params) - 1:
            x_ref = jnp.maximum(x_ref, 0.0)
    max_err = float(jnp.max(jnp.abs(out - x_ref)))
    assert jnp.allclose(out, x_ref, atol=5e-2, rtol=5e-2), max_err

    print("KERNEL_OK")
</pallas_src>

<mosaic_0001>
module attributes {stable_mosaic.version = 11 : i64} {
  func.func @_sage_layer_kernel(%arg0: i32, %arg1: memref<128x128xbf16, #tpu.memory_space<vmem>>, %arg2: memref<128x128xbf16, #tpu.memory_space<vmem>>, %arg3: memref<256x128xbf16, #tpu.memory_space<vmem>>, %arg4: memref<1x128xf32, #tpu.memory_space<vmem>>, %arg5: memref<128x128xbf16, #tpu.memory_space<vmem>>) attributes {dimension_semantics = [#tpu.dimension_semantics<parallel>], iteration_bounds = array<i64: 1>, scalar_prefetch = 0 : i64, scratch_operands = 0 : i64, tpu.core_type = #tpu.core_type<tc>, window_params = [{transform_indices = @transform_0, window_bounds = array<i64: 128, 128>}, {pipeline_mode = #tpu.pipeline_mode<synchronous>, transform_indices = @transform_1, window_bounds = array<i64: 128, 128>}, {pipeline_mode = #tpu.pipeline_mode<synchronous>, transform_indices = @transform_2, window_bounds = array<i64: 256, 128>}, {pipeline_mode = #tpu.pipeline_mode<synchronous>, transform_indices = @transform_3, window_bounds = array<i64: 1, 128>}, {transform_indices = @transform_4, window_bounds = array<i64: 128, 128>}]} {
    %c128_i32 = arith.constant 128 : i32
    %0 = arith.muli %arg0, %c128_i32 : i32
    %1 = tpu.assume_multiple %0, 128 : i32
    %c0 = arith.constant 0 : index
    %c0_0 = arith.constant 0 : index
    %2 = vector.load %arg1[%c0, %c0_0] : memref<128x128xbf16, #tpu.memory_space<vmem>>, vector<128x128xbf16>
    %c0_1 = arith.constant 0 : index
    %c0_2 = arith.constant 0 : index
    %3 = vector.load %arg2[%c0_1, %c0_2] : memref<128x128xbf16, #tpu.memory_space<vmem>>, vector<128x128xbf16>
    %cst = arith.constant dense<0.000000e+00> : vector<128x128xf32>
    %4 = tpu.matmul %2, %3, %cst {dimension_numbers = #tpu.dot_dimension_numbers<[1], [0], [0], [1], [0, 0, 1, 1], [], []>} : vector<128x128xbf16>, vector<128x128xbf16>, vector<128x128xf32> -> vector<128x128xf32>
    %5 = arith.index_cast %1 : i32 to index
    %c0_3 = arith.constant 0 : index
    %6 = vector.load %arg2[%5, %c0_3] : memref<128x128xbf16, #tpu.memory_space<vmem>>, vector<128x128xbf16>
    %7 = arith.truncf %4 : vector<128x128xf32> to vector<128x128xbf16>
    %8 = tpu.concatenate %7, %6 in 1 : vector<128x128xbf16>, vector<128x128xbf16> -> vector<128x256xbf16>
    %c0_4 = arith.constant 0 : index
    %c0_5 = arith.constant 0 : index
    %9 = vector.load %arg3[%c0_4, %c0_5] : memref<256x128xbf16, #tpu.memory_space<vmem>>, vector<256x128xbf16>
    %cst_6 = arith.constant dense<0.000000e+00> : vector<128x128xf32>
    %10 = tpu.matmul %8, %9, %cst_6 {dimension_numbers = #tpu.dot_dimension_numbers<[1], [0], [0], [1], [0, 0, 1, 1], [], []>} : vector<128x256xbf16>, vector<256x128xbf16>, vector<128x128xf32> -> vector<128x128xf32>
    %c0_7 = arith.constant 0 : index
    %c0_8 = arith.constant 0 : index
    %11 = vector.load %arg4[%c0_7, %c0_8] : memref<1x128xf32, #tpu.memory_space<vmem>>, vector<1x128xf32>
    %12 = vector.broadcast %11 : vector<1x128xf32> to vector<128x128xf32>
    %13 = arith.addf %10, %12 : vector<128x128xf32>
    %cst_9 = arith.constant 0.000000e+00 : f32
    %14 = vector.broadcast %cst_9 : f32 to vector<128x128xf32>
    %15 = arith.maximumf %13, %14 : vector<128x128xf32>
    %16 = arith.truncf %15 : vector<128x128xf32> to vector<128x128xbf16>
    %c0_10 = arith.constant 0 : index
    %c0_11 = arith.constant 0 : index
    %17 = vector.load %arg5[%c0_10, %c0_11] : memref<128x128xbf16, #tpu.memory_space<vmem>>, vector<128x128xbf16>
    tpu.vector_store %arg5[%c0_10, %c0_11], %16 {strides = array<i32>} : memref<128x128xbf16, #tpu.memory_space<vmem>>, vector<128x128xbf16>,
    return
  }
  func.func @transform_0(%arg0: i32) -> (i32, i32) {
    %c0_i32 = arith.constant 0 : i32
    %c0_i32_0 = arith.constant 0 : i32
    return %arg0, %c0_i32 : i32, i32
  }
  func.func @transform_1(%arg0: i32) -> (i32, i32) {
    %c0_i32 = arith.constant 0 : i32
    %c0_i32_0 = arith.constant 0 : i32
    %c0_i32_1 = arith.constant 0 : i32
    return %c0_i32, %c0_i32_0 : i32, i32
  }
  func.func @transform_2(%arg0: i32) -> (i32, i32) {
    %c0_i32 = arith.constant 0 : i32
    %c0_i32_0 = arith.constant 0 : i32
    %c0_i32_1 = arith.constant 0 : i32
    return %c0_i32, %c0_i32_0 : i32, i32
  }
  func.func @transform_3(%arg0: i32) -> (i32, i32) {
    %c0_i32 = arith.constant 0 : i32
    %c0_i32_0 = arith.constant 0 : i32
    %c0_i32_1 = arith.constant 0 : i32
    return %c0_i32, %c0_i32_0 : i32, i32
  }
  func.func @transform_4(%arg0: i32) -> (i32, i32) {
    %c0_i32 = arith.constant 0 : i32
    %c0_i32_0 = arith.constant 0 : i32
    return %arg0, %c0_i32 : i32, i32
  }
}

</mosaic_0001>

<llo_original>
// kernel: tpu_custom_call.1
$region0: #{tpu_custom_call.1}
  #allocation0 [shape = 'u32[]', space=smem, size = 0x4, offset = 0x4, fixed_abs, tag = 'smem constant byte address 0x4 - core index']
  #allocation1 [shape = 'u32[144,128]{1,0:T(1,128)}', space=vmem, size = 0x12000, scoped, tag = 'internal scratch']
  %s0 = inlined_call_operand.hbm [shape: bf16[128,128], index: 0, kind: input, shape index: {}]
  %s1 = inlined_call_operand.hbm [shape: bf16[128,128], index: 1, kind: input, shape index: {}]
  %s2 = inlined_call_operand.hbm [shape: bf16[256,128], index: 2, kind: input, shape index: {}]
  %s3 = inlined_call_operand.vmem [shape: f32[1,128], index: 3, kind: input, shape index: {}]
  %s4 = inlined_call_operand.hbm [shape: bf16[128,128], index: 4, kind: output, shape index: {}]
  %s5 = sld [smem:[#allocation0]]
  $region38: #{tpu_custom_call.1} parent=0
    _
  %s7 = ssub.s32 1, %s5
  %s8 = scalar_select 0, %s7, %s5
  $region1: #{tpu_custom_call.1} parent=0
    #allocation2 [shape = 'u8[32768]{0}', space=vmem, size = 0x8000, scoped, tag = 'input window, operand 0, single buffered']
    #allocation3 [shape = 's32[1]{0}', space=sflag, size = 0x4, scoped, tag = 'scoped memory for tpu_custom_call.1']
    #allocation4 [shape = 's32[1]{0}', space=sflag, size = 0x4, scoped, tag = 'scoped memory for tpu_custom_call.1']
    #allocation5 [shape = 'u8[32768]{0}', space=vmem, size = 0x8000, scoped, tag = 'input window, operand 1, single buffered']
    #allocation6 [shape = 's32[1]{0}', space=sflag, size = 0x4, scoped, tag = 'scoped memory for tpu_custom_call.1']
    #allocation7 [shape = 'u8[65536]{0}', space=vmem, size = 0x10000, scoped, tag = 'input window, operand 2, single buffered']
    #allocation8 [shape = 'u8[32768]{0}', space=vmem, size = 0x8000, scoped, tag = 'output window, operand 0, single buffered']
    %9 = vsyncpa [#allocation3], 0
    %10 = vsyncpa [#allocation6], 0
    %11 = vsyncpa [#allocation4], 0
    // Predicated region
    $region2: #{tpu_custom_call.1} parent=1 // pred_check
      _
    $region3: #{tpu_custom_call.1} parent=1 // pred_check_branch
      %13 = sbr.rel (0) target = $region5
    $region4: #{tpu_custom_call.1} parent=1 // pred_region
      %s15 = ssub.s32 1024, 1024
      %16 = vsyncadd [#allocation3], %s15
      %s17 = sshll.u32 [#allocation2], 4
      %s18 = int_to_ptr.vmem [resolvable:$true] %s17
      %23 = dma.hbm_to_vmem [thread:$0]  %s0, 1024, %s18, [#allocation3], 64, 64, 4
    $region5: #{tpu_custom_call.1} parent=1 // pred_fallthru
      _
    // Predicated region
    $region6: #{tpu_custom_call.1} parent=1 // pred_check
      _
    $region7: #{tpu_custom_call.1} parent=1 // pred_check_branch
      %25 = sbr.rel (0) target = $region9
    $region8: #{tpu_custom_call.1} parent=1 // pred_region
      %s27 = ssub.s32 1024, 1024
      %28 = vsyncadd [#allocation6], %s27
      %s29 = sshll.u32 [#allocation5], 4
      %s30 = int_to_ptr.vmem [resolvable:$true] %s29
      %35 = dma.hbm_to_vmem [thread:$0]  %s1, 1024, %s30, [#allocation6], 64, 64, 4
    $region9: #{tpu_custom_call.1} parent=1 // pred_fallthru
      _
    // Predicated region
    $region10: #{tpu_custom_call.1} parent=1 // pred_check
      _
    $region11: #{tpu_custom_call.1} parent=1 // pred_check_branch
      %37 = sbr.rel (0) target = $region13
    $region12: #{tpu_custom_call.1} parent=1 // pred_region
      %s39 = ssub.s32 2048, 2048
      %40 = vsyncadd [#allocation6], %s39
      %s41 = sshll.u32 [#allocation7], 4
      %s42 = int_to_ptr.vmem [resolvable:$true] %s41
      %47 = dma.hbm_to_vmem [thread:$0]  %s2, 2048, %s42, [#allocation6], 64, 64, 4
    $region13: #{tpu_custom_call.1} parent=1 // pred_fallthru
      _
    // Predicated region
    $region14: #{tpu_custom_call.1} parent=1 // pred_check
      _
    $region15: #{tpu_custom_call.1} parent=1 // pred_check_branch
      %49 = sbr.rel (0) target = $region17
    $region16: #{tpu_custom_call.1} parent=1 // pred_region
      _
    $region17: #{tpu_custom_call.1} parent=1 // pred_fallthru
      _
    // Predicated region
    $region18: #{tpu_custom_call.1} parent=1 // pred_check
      _
    $region19: #{tpu_custom_call.1} parent=1 // pred_check_branch
      %51 = sbr.rel (0) target = $region21
    $region20: #{tpu_custom_call.1} parent=1 // pred_region
      %52 = dma.done [#allocation3], 1024
    $region21: #{tpu_custom_call.1} parent=1 // pred_fallthru
      _
    // Predicated region
    $region22: #{tpu_custom_call.1} parent=1 // pred_check
      _
    $region23: #{tpu_custom_call.1} parent=1 // pred_check_branch
      %54 = sbr.rel (0) target = $region25
    $region24: #{tpu_custom_call.1} parent=1 // pred_region
      %55 = dma.done [#allocation6], 1024
    $region25: #{tpu_custom_call.1} parent=1 // pred_fallthru
      _
    // Predicated region
    $region26: #{tpu_custom_call.1} parent=1 // pred_check
      _
    $region27: #{tpu_custom_call.1} parent=1 // pred_check_branch
      %57 = sbr.rel (0) target = $region29
    $region28: #{tpu_custom_call.1} parent=1 // pred_region
      %58 = dma.done [#allocation6], 2048
    $region29: #{tpu_custom_call.1} parent=1 // pred_fallthru
      _
    %s60 = smul.u32 0, 128
    %v61 = vld [vmem:[#allocation2] sm:$0xf]
    %v62 = vld [vmem:[#allocation2 + $0x4] sm:$0xf]
    %v63 = vld [vmem:[#allocation2 + $0x8] sm:$0xf]
    %v64 = vld [vmem:[#allocation2 + $0xc] sm:$0xf]
    %v65 = vld [vmem:[#allocation2 + $0x10] sm:$0xf]
    %v66 = vld [vmem:[#allocation2 + $0x14] sm:$0xf]
    %v67 = vld [vmem:[#allocation2 + $0x18] sm:$0xf]
    %v68 = vld [vmem:[#allocation2 + $0x1c] sm:$0xf]
    %v69 = vld [vmem:[#allocation2 + $0x20] sm:$0xf]
    %v70 = vld [vmem:[#allocation2 + $0x24] sm:$0xf]
    %v71 = vld [vmem:[#allocation2 + $0x28] sm:$0xf]
    %v72 = vld [vmem:[#allocation2 + $0x2c] sm:$0xf]
    %v73 = vld [vmem:[#allocation2 + $0x30] sm:$0xf]
    %v74 = vld [vmem:[#allocation2 + $0x34] sm:$0xf]
    %v75 = vld [vmem:[#allocation2 + $0x38] sm:$0xf]
    %v76 = vld [vmem:[#allocation2 + $0x3c] sm:$0xf]
    %v77 = vld [vmem:[#allocation5] sm:$0xf]
    %v78 = vld [vmem:[#allocation5 + $0x4] sm:$0xf]
    %v79 = vld [vmem:[#allocation5 + $0x8] sm:$0xf]
    %v80 = vld [vmem:[#allocation5 + $0xc] sm:$0xf]
    %v81 = vld [vmem:[#allocation5 + $0x10] sm:$0xf]
    %v82 = vld [vmem:[#allocation5 + $0x14] sm:$0xf]
    %v83 = vld [vmem:[#allocation5 + $0x18] sm:$0xf]
    %v84 = vld [vmem:[#allocation5 + $0x1c] sm:$0xf]
    %v85 = vld [vmem:[#allocation5 + $0x20] sm:$0xf]
    %v86 = vld [vmem:[#allocation5 + $0x24] sm:$0xf]
    %v87 = vld [vmem:[#allocation5 + $0x28] sm:$0xf]
    %v88 = vld [vmem:[#allocation5 + $0x2c] sm:$0xf]
    %v89 = vld [vmem:[#allocation5 + $0x30] sm:$0xf]
    %v90 = vld [vmem:[#allocation5 + $0x34] sm:$0xf]
    %v91 = vld [vmem:[#allocation5 + $0x38] sm:$0xf]
    %v92 = vld [vmem:[#allocation5 + $0x3c] sm:$0xf]
    %v109 = vunpack.c.l.b16 %v61
    %v110 = vunpack.c.l.b16 %v62
    %v111 = vunpack.c.l.b16 %v63
    %v112 = vunpack.c.l.b16 %v64
    %v113 = vunpack.c.l.b16 %v65
    %v114 = vunpack.c.l.b16 %v66
    %v115 = vunpack.c.l.b16 %v67
    %v116 = vunpack.c.l.b16 %v68
    %v117 = vunpack.c.l.b16 %v69
    %v118 = vunpack.c.l.b16 %v70
    %v119 = vunpack.c.l.b16 %v71
    %v120 = vunpack.c.l.b16 %v72
    %v121 = vunpack.c.l.b16 %v73
    %v122 = vunpack.c.l.b16 %v74
    %v123 = vunpack.c.l.b16 %v75
    %v124 = vunpack.c.l.b16 %v76
    %v125 = vpack.c.b16 %v110, %v109
    %v126 = vpack.c.b16 %v112, %v111
    %v127 = vpack.c.b16 %v114, %v113
    %v128 = vpack.c.b16 %v116, %v115
    %v129 = vpack.c.b16 %v118, %v117
    %v130 = vpack.c.b16 %v120, %v119
    %v131 = vpack.c.b16 %v122, %v121
    %v132 = vpack.c.b16 %v124, %v123
    %v157 = vunpack.c.l.b16 %v77
    %v158 = vunpack.c.l.b16 %v78
    %v159 = vunpack.c.l.b16 %v79
    %v160 = vunpack.c.l.b16 %v80
    %v161 = vunpack.c.l.b16 %v81
    %v162 = vunpack.c.l.b16 %v82
    %v163 = vunpack.c.l.b16 %v83
    %v164 = vunpack.c.l.b16 %v84
    %v165 = vunpack.c.l.b16 %v85
    %v166 = vunpack.c.l.b16 %v86
    %v167 = vunpack.c.l.b16 %v87
    %v168 = vunpack.c.l.b16 %v88
    %v169 = vunpack.c.l.b16 %v89
    %v170 = vunpack.c.l.b16 %v90
    %v171 = vunpack.c.l.b16 %v91
    %v172 = vunpack.c.l.b16 %v92
    %v173 = vpack.c.b16 %v158, %v157
    %v174 = vpack.c.b16 %v160, %v159
    %v175 = vpack.c.b16 %v162, %v161
    %v176 = vpack.c.b16 %v164, %v163
    %v177 = vpack.c.b16 %v166, %v165
    %v178 = vpack.c.b16 %v168, %v167
    %v179 = vpack.c.b16 %v170, %v169
    %v180 = vpack.c.b16 %v172, %v171
    %189 = vmatprep.subr.bf16.mxu0 0
    %190 = vmatpush1.bf16.msra.mxu0 %v180
    %191 = vmatprep.subr.bf16.mxu0 0
    %192 = vmatpush1.bf16.msra.mxu0 %v179
    %193 = vmatprep.subr.bf16.mxu0 0
    %194 = vmatpush1.bf16.msra.mxu0 %v178
    %195 = vmatprep.subr.bf16.mxu0 0
    %196 = vmatpush1.bf16.msra.mxu0 %v177
    %197 = vmatprep.subr.bf16.mxu0 0
    %198 = vmatpush1.bf16.msra.mxu0 %v176
    %199 = vmatprep.subr.bf16.mxu0 0
    %200 = vmatpush1.bf16.msra.mxu0 %v175
    %201 = vmatprep.subr.bf16.mxu0 0
    %202 = vmatpush1.bf16.msra.mxu0 %v174
    %203 = vmatprep.subr.bf16.mxu0 0
    %204 = vmatpush1.bf16.msra.mxu0 %v173
    %205 = vmatprep.subr.bf16.mxu0 0
    %206 = vmatpush2.bf16.msra.mxu0 0
    %207 = vmatprep.subr.bf16.mxu0 0
    %208 = vmatpush2.bf16.msra.mxu0 0
    %209 = vmatprep.subr.bf16.mxu0 0
    %210 = vmatpush2.bf16.msra.mxu0 0
    %211 = vmatprep.subr.bf16.mxu0 0
    %212 = vmatpush2.bf16.msra.mxu0 0
    %213 = vmatprep.subr.bf16.mxu0 0
    %214 = vmatpush2.bf16.msra.mxu0 0
    %215 = vmatprep.subr.bf16.mxu0 0
    %216 = vmatpush2.bf16.msra.mxu0 0
    %217 = vmatprep.subr.bf16.mxu0 0
    %218 = vmatpush2.bf16.msra.mxu0 0
    %219 = vmatprep.subr.bf16.mxu0 0
    %220 = vmatpush2.bf16.msra.mxu0 0
    %221 = vmatprep.mubr.bf16.mxu0 0
    %222 = vmatmul.mubr.bf16.gmra.mxu0 %v125
    %v223 = vpop.f32.mrf.mxu0
    %v224 = vadd.f32 0.0, %v223
    %v225 = vpop.f32.mrf.mxu0
    %v226 = vpop.f32.mrf.mxu0
    %v227 = vadd.f32 0.0, %v226
    %v228 = vpop.f32.mrf.mxu0
    %229 = vmatprep.mubr.bf16.mxu0 0
    %230 = vmatmul.mubr.bf16.gmra.mxu0 %v126
    %v231 = vpop.f32.mrf.mxu0
    %v232 = vadd.f32 0.0, %v231
    %v233 = vpop.f32.mrf.mxu0
    %v234 = vpop.f32.mrf.mxu0
    %v235 = vadd.f32 0.0, %v234
    %v236 = vpop.f32.mrf.mxu0
    %237 = vmatprep.mubr.bf16.mxu0 0
    %238 = vmatmul.mubr.bf16.gmra.mxu0 %v127
    %v239 = vpop.f32.mrf.mxu0
    %v240 = vadd.f32 0.0, %v239
    %v241 = vpop.f32.mrf.mxu0
    %v242 = vpop.f32.mrf.mxu0
    %v243 = vadd.f32 0.0, %v242
    %v244 = vpop.f32.mrf.mxu0
    %245 = vmatprep.mubr.bf16.mxu0 0
    %246 = vmatmul.mubr.bf16.gmra.mxu0 %v128
    %v247 = vpop.f32.mrf.mxu0
    %v248 = vadd.f32 0.0, %v247
    %v249 = vpop.f32.mrf.mxu0
    %v250 = vpop.f32.mrf.mxu0
    %v251 = vadd.f32 0.0, %v250
    %v252 = vpop.f32.mrf.mxu0
    %253 = vmatprep.mubr.bf16.mxu0 0
    %254 = vmatmul.mubr.bf16.gmra.mxu0 %v129
    %v255 = vpop.f32.mrf.mxu0
    %v256 = vadd.f32 0.0, %v255
    %v257 = vpop.f32.mrf.mxu0
    %v258 = vpop.f32.mrf.mxu0
    %v259 = vadd.f32 0.0, %v258
    %v260 = vpop.f32.mrf.mxu0
    %261 = vmatprep.mubr.bf16.mxu0 0
    %262 = vmatmul.mubr.bf16.gmra.mxu0 %v130
    %v263 = vpop.f32.mrf.mxu0
    %v264 = vadd.f32 0.0, %v263
    %v265 = vpop.f32.mrf.mxu0
    %v266 = vpop.f32.mrf.mxu0
    %v267 = vadd.f32 0.0, %v266
    %v268 = vpop.f32.mrf.mxu0
    %269 = vmatprep.mubr.bf16.mxu0 0
    %270 = vmatmul.mubr.bf16.gmra.mxu0 %v131
    %v271 = vpop.f32.mrf.mxu0
    %v272 = vadd.f32 0.0, %v271
    %v273 = vpop.f32.mrf.mxu0
    %v274 = vpop.f32.mrf.mxu0
    %v275 = vadd.f32 0.0, %v274
    %v276 = vpop.f32.mrf.mxu0
    %277 = vmatprep.mubr.bf16.mxu0 0
    %278 = vmatmul.mubr.bf16.gmra.mxu0 %v132
    %v279 = vpop.f32.mrf.mxu0
    %v280 = vadd.f32 0.0, %v279
    %v281 = vpop.f32.mrf.mxu0
    %v282 = vpop.f32.mrf.mxu0
    %v283 = vadd.f32 0.0, %v282
    %v284 = vpop.f32.mrf.mxu0
    %285 = vdwg.mxu0
    %s286 = sshra.s32 %s60, 3
    %s287 = sand.u32 %s60, 7
    %s288 = smul.addr %s286, 4
    %s289 = scalar_lea.vmem [#allocation5], %s288
    %v290 = vld [vmem:[%s289] sm:$0xf]
    %v291 = vld [vmem:[%s289 + $0x4] sm:$0xf]
    %v292 = vld [vmem:[%s289 + $0x8] sm:$0xf]
    %v293 = vld [vmem:[%s289 + $0xc] sm:$0xf]
    %v294 = vld [vmem:[%s289 + $0x10] sm:$0xf]
    %v295 = vld [vmem:[%s289 + $0x14] sm:$0xf]
    %v296 = vld [vmem:[%s289 + $0x18] sm:$0xf]
    %v297 = vld [vmem:[%s289 + $0x1c] sm:$0xf]
    %v298 = vld [vmem:[%s289 + $0x20] sm:$0xf]
    %v299 = vld [vmem:[%s289 + $0x24] sm:$0xf]
    %v300 = vld [vmem:[%s289 + $0x28] sm:$0xf]
    %v301 = vld [vmem:[%s289 + $0x2c] sm:$0xf]
    %v302 = vld [vmem:[%s289 + $0x30] sm:$0xf]
    %v303 = vld [vmem:[%s289 + $0x34] sm:$0xf]
    %v304 = vld [vmem:[%s289 + $0x38] sm:$0xf]
    %v305 = vld [vmem:[%s289 + $0x3c] sm:$0xf]
    %v306 = vpack.c.bf16 %v227, %v224
    %v307 = vpack.c.bf16 %v235, %v232
    %v308 = vpack.c.bf16 %v243, %v240
    %v309 = vpack.c.bf16 %v251, %v248
    %v310 = vpack.c.bf16 %v259, %v256
    %v311 = vpack.c.bf16 %v267, %v264
    %v312 = vpack.c.bf16 %v275, %v272
    %v313 = vpack.c.bf16 %v283, %v280
    %v330 = vunpack.c.l.b16 %v290
    %v331 = vunpack.c.l.b16 %v291
    %v332 = vunpack.c.l.b16 %v292
    %v333 = vunpack.c.l.b16 %v293
    %v334 = vunpack.c.l.b16 %v294
    %v335 = vunpack.c.l.b16 %v295
    %v336 = vunpack.c.l.b16 %v296
    %v337 = vunpack.c.l.b16 %v297
    %v338 = vunpack.c.l.b16 %v298
    %v339 = vunpack.c.l.b16 %v299
    %v340 = vunpack.c.l.b16 %v300
    %v341 = vunpack.c.l.b16 %v301
    %v342 = vunpack.c.l.b16 %v302
    %v343 = vunpack.c.l.b16 %v303
    %v344 = vunpack.c.l.b16 %v304
    %v345 = vunpack.c.l.b16 %v305
    %v346 = vpack.c.b16 %v331, %v330
    %v347 = vpack.c.b16 %v333, %v332
    %v348 = vpack.c.b16 %v335, %v334
    %v349 = vpack.c.b16 %v337, %v336
    %v350 = vpack.c.b16 %v339, %v338
    %v351 = vpack.c.b16 %v341, %v340
    %v352 = vpack.c.b16 %v343, %v342
    %v353 = vpack.c.b16 %v345, %v344
    %v362 = vld [vmem:[#allocation7] sm:$0xf]
    %v363 = vld [vmem:[#allocation7 + $0x4] sm:$0xf]
    %v364 = vld [vmem:[#allocation7 + $0x8] sm:$0xf]
    %v365 = vld [vmem:[#allocation7 + $0xc] sm:$0xf]
    %v366 = vld [vmem:[#allocation7 + $0x10] sm:$0xf]
    %v367 = vld [vmem:[#allocation7 + $0x14] sm:$0xf]
    %v368 = vld [vmem:[#allocation7 + $0x18] sm:$0xf]
    %v369 = vld [vmem:[#allocation7 + $0x1c] sm:$0xf]
    %v370 = vld [vmem:[#allocation7 + $0x20] sm:$0xf]
    %v371 = vld [vmem:[#allocation7 + $0x24] sm:$0xf]
    %v372 = vld [vmem:[#allocation7 + $0x28] sm:$0xf]
    %v373 = vld [vmem:[#allocation7 + $0x2c] sm:$0xf]
    %v374 = vld [vmem:[#allocation7 + $0x30] sm:$0xf]
    %v375 = vld [vmem:[#allocation7 + $0x34] sm:$0xf]
    %v376 = vld [vmem:[#allocation7 + $0x38] sm:$0xf]
    %v377 = vld [vmem:[#allocation7 + $0x3c] sm:$0xf]
    %v378 = vld [vmem:[#allocation7 + $0x40] sm:$0xf]
    %v379 = vld [vmem:[#allocation7 + $0x44] sm:$0xf]
    %v380 = vld [vmem:[#allocation7 + $0x48] sm:$0xf]
    %v381 = vld [vmem:[#allocation7 + $0x4c] sm:$0xf]
    %v382 = vld [vmem:[#allocation7 + $0x50] sm:$0xf]
    %v383 = vld [vmem:[#allocation7 + $0x54] sm:$0xf]
    %v384 = vld [vmem:[#allocation7 + $0x58] sm:$0xf]
    %v385 = vld [vmem:[#allocation7 + $0x5c] sm:$0xf]
    %v386 = vld [vmem:[#allocation7 + $0x60] sm:$0xf]
    %v387 = vld [vmem:[#allocation7 + $0x64] sm:$0xf]
    %v388 = vld [vmem:[#allocation7 + $0x68] sm:$0xf]
    %v389 = vld [vmem:[#allocation7 + $0x6c] sm:$0xf]
    %v390 = vld [vmem:[#allocation7 + $0x70] sm:$0xf]
    %v391 = vld [vmem:[#allocation7 + $0x74] sm:$0xf]
    %v392 = vld [vmem:[#allocation7 + $0x78] sm:$0xf]
    %v393 = vld [vmem:[#allocation7 + $0x7c] sm:$0xf]
    %v394 = vld [vmem:[%s3] sm:$0x1]
    %v396 = vlaneseq
    %v397 = vshrl.u32 %v396, 7
    %v398 = vsub.s32 0, %v397
    %v399 = vrot.slane %v394, %v398
    %v433 = vunpack.c.l.b16 %v362
    %v434 = vunpack.c.l.b16 %v363
    %v435 = vunpack.c.l.b16 %v364
    %v436 = vunpack.c.l.b16 %v365
    %v437 = vunpack.c.l.b16 %v366
    %v438 = vunpack.c.l.b16 %v367
    %v439 = vunpack.c.l.b16 %v368
    %v440 = vunpack.c.l.b16 %v369
    %v441 = vunpack.c.l.b16 %v370
    %v442 = vunpack.c.l.b16 %v371
    %v443 = vunpack.c.l.b16 %v372
    %v444 = vunpack.c.l.b16 %v373
    %v445 = vunpack.c.l.b16 %v374
    %v446 = vunpack.c.l.b16 %v375
    %v447 = vunpack.c.l.b16 %v376
    %v448 = vunpack.c.l.b16 %v377
    %v449 = vunpack.c.l.b16 %v378
    %v450 = vunpack.c.l.b16 %v379
    %v451 = vunpack.c.l.b16 %v380
    %v452 = vunpack.c.l.b16 %v381
    %v453 = vunpack.c.l.b16 %v382
    %v454 = vunpack.c.l.b16 %v383
    %v455 = vunpack.c.l.b16 %v384
    %v456 = vunpack.c.l.b16 %v385
    %v457 = vunpack.c.l.b16 %v386
    %v458 = vunpack.c.l.b16 %v387
    %v459 = vunpack.c.l.b16 %v388
    %v460 = vunpack.c.l.b16 %v389
    %v461 = vunpack.c.l.b16 %v390
    %v462 = vunpack.c.l.b16 %v391
    %v463 = vunpack.c.l.b16 %v392
    %v464 = vunpack.c.l.b16 %v393
    %v465 = vpack.c.b16 %v434, %v433
    %v466 = vpack.c.b16 %v436, %v435
    %v467 = vpack.c.b16 %v438, %v437
    %v468 = vpack.c.b16 %v440, %v439
    %v469 = vpack.c.b16 %v442, %v441
    %v470 = vpack.c.b16 %v444, %v443
    %v471 = vpack.c.b16 %v446, %v445
    %v472 = vpack.c.b16 %v448, %v447
    %v473 = vpack.c.b16 %v450, %v449
    %v474 = vpack.c.b16 %v452, %v451
    %v475 = vpack.c.b16 %v454, %v453
    %v476 = vpack.c.b16 %v456, %v455
    %v477 = vpack.c.b16 %v458, %v457
    %v478 = vpack.c.b16 %v460, %v459
    %v479 = vpack.c.b16 %v462, %v461
    %v480 = vpack.c.b16 %v464, %v463
    %497 = vmatprep.subr.bf16.mxu0 0
    %498 = vmatpush1.bf16.msra.mxu0 %v472
    %499 = vmatprep.subr.bf16.mxu0 0
    %500 = vmatpush1.bf16.msra.mxu0 %v471
    %501 = vmatprep.subr.bf16.mxu0 0
    %502 = vmatpush1.bf16.msra.mxu0 %v470
    %503 = vmatprep.subr.bf16.mxu0 0
    %504 = vmatpush1.bf16.msra.mxu0 %v469
    %505 = vmatprep.subr.bf16.mxu0 0
    %506 = vmatpush1.bf16.msra.mxu0 %v468
    %507 = vmatprep.subr.bf16.mxu0 0
    %508 = vmatpush1.bf16.msra.mxu0 %v467
    %509 = vmatprep.subr.bf16.mxu0 0
    %510 = vmatpush1.bf16.msra.mxu0 %v466
    %511 = vmatprep.subr.bf16.mxu0 0
    %512 = vmatpush1.bf16.msra.mxu0 %v465
    %513 = vmatprep.subr.bf16.mxu0 0
    %514 = vmatpush2.bf16.msra.mxu0 %v480
    %515 = vmatprep.subr.bf16.mxu0 0
    %516 = vmatpush2.bf16.msra.mxu0 %v479
    %517 = vmatprep.subr.bf16.mxu0 0
    %518 = vmatpush2.bf16.msra.mxu0 %v478
    %519 = vmatprep.subr.bf16.mxu0 0
    %520 = vmatpush2.bf16.msra.mxu0 %v477
    %521 = vmatprep.subr.bf16.mxu0 0
    %522 = vmatpush2.bf16.msra.mxu0 %v476
    %523 = vmatprep.subr.bf16.mxu0 0
    %524 = vmatpush2.bf16.msra.mxu0 %v475
    %525 = vmatprep.subr.bf16.mxu0 0
    %526 = vmatpush2.bf16.msra.mxu0 %v474
    %527 = vmatprep.subr.bf16.mxu0 0
    %528 = vmatpush2.bf16.msra.mxu0 %v473
    %529 = vmatprep.mubr.bf16.mxu0 %v346
    %530 = vmatmul.mubr.bf16.gmra.mxu0 %v306
    %v531 = vpop.f32.mrf.mxu0
    %v532 = vadd.f32 %v399, %v531
    %v533 = vpop.f32.mrf.mxu0
    %v534 = vpop.f32.mrf.mxu0
    %v535 = vadd.f32 %v399, %v534
    %v536 = vpop.f32.mrf.mxu0
    %537 = vmatprep.mubr.bf16.mxu0 %v347
    %538 = vmatmul.mubr.bf16.gmra.mxu0 %v307
    %v539 = vpop.f32.mrf.mxu0
    %v540 = vadd.f32 %v399, %v539
    %v541 = vpop.f32.mrf.mxu0
    %v542 = vpop.f32.mrf.mxu0
    %v543 = vadd.f32 %v399, %v542
    %v544 = vpop.f32.mrf.mxu0
    %545 = vmatprep.mubr.bf16.mxu0 %v348
    %546 = vmatmul.mubr.bf16.gmra.mxu0 %v308
    %v547 = vpop.f32.mrf.mxu0
    %v548 = vadd.f32 %v399, %v547
    %v549 = vpop.f32.mrf.mxu0
    %v550 = vpop.f32.mrf.mxu0
    %v551 = vadd.f32 %v399, %v550
    %v552 = vpop.f32.mrf.mxu0
    %553 = vmatprep.mubr.bf16.mxu0 %v349
    %554 = vmatmul.mubr.bf16.gmra.mxu0 %v309
    %v555 = vpop.f32.mrf.mxu0
    %v556 = vadd.f32 %v399, %v555
    %v557 = vpop.f32.mrf.mxu0
    %v558 = vpop.f32.mrf.mxu0
    %v559 = vadd.f32 %v399, %v558
    %v560 = vpop.f32.mrf.mxu0
    %561 = vmatprep.mubr.bf16.mxu0 %v350
    %562 = vmatmul.mubr.bf16.gmra.mxu0 %v310
    %v563 = vpop.f32.mrf.mxu0
    %v564 = vadd.f32 %v399, %v563
    %v565 = vpop.f32.mrf.mxu0
    %v566 = vpop.f32.mrf.mxu0
    %v567 = vadd.f32 %v399, %v566
    %v568 = vpop.f32.mrf.mxu0
    %569 = vmatprep.mubr.bf16.mxu0 %v351
    %570 = vmatmul.mubr.bf16.gmra.mxu0 %v311
    %v571 = vpop.f32.mrf.mxu0
    %v572 = vadd.f32 %v399, %v571
    %v573 = vpop.f32.mrf.mxu0
    %v574 = vpop.f32.mrf.mxu0
    %v575 = vadd.f32 %v399, %v574
    %v576 = vpop.f32.mrf.mxu0
    %577 = vmatprep.mubr.bf16.mxu0 %v352
    %578 = vmatmul.mubr.bf16.gmra.mxu0 %v312
    %v579 = vpop.f32.mrf.mxu0
    %v580 = vadd.f32 %v399, %v579
    %v581 = vpop.f32.mrf.mxu0
    %v582 = vpop.f32.mrf.mxu0
    %v583 = vadd.f32 %v399, %v582
    %v584 = vpop.f32.mrf.mxu0
    %585 = vmatprep.mubr.bf16.mxu0 %v353
    %586 = vmatmul.mubr.bf16.gmra.mxu0 %v313
    %v587 = vpop.f32.mrf.mxu0
    %v588 = vadd.f32 %v399, %v587
    %v589 = vpop.f32.mrf.mxu0
    %v590 = vpop.f32.mrf.mxu0
    %v591 = vadd.f32 %v399, %v590
    %v592 = vpop.f32.mrf.mxu0
    %593 = vdwg.mxu0
    %v594 = vmax.f32 %v532, 0.0
    %v595 = vmax.f32 %v535, 0.0
    %v596 = vmax.f32 %v540, 0.0
    %v597 = vmax.f32 %v543, 0.0
    %v598 = vmax.f32 %v548, 0.0
    %v599 = vmax.f32 %v551, 0.0
    %v600 = vmax.f32 %v556, 0.0
    %v601 = vmax.f32 %v559, 0.0
    %v602 = vmax.f32 %v564, 0.0
    %v603 = vmax.f32 %v567, 0.0
    %v604 = vmax.f32 %v572, 0.0
    %v605 = vmax.f32 %v575, 0.0
    %v606 = vmax.f32 %v580, 0.0
    %v607 = vmax.f32 %v583, 0.0
    %v608 = vmax.f32 %v588, 0.0
    %v609 = vmax.f32 %v591, 0.0
    %v610 = vpack.c.bf16 %v595, %v594
    %v611 = vpack.c.bf16 %v597, %v596
    %v612 = vpack.c.bf16 %v599, %v598
    %v613 = vpack.c.bf16 %v601, %v600
    %v614 = vpack.c.bf16 %v603, %v602
    %v615 = vpack.c.bf16 %v605, %v604
    %v616 = vpack.c.bf16 %v607, %v606
    %v617 = vpack.c.bf16 %v609, %v608
    %v626 = vunpack.c.l.b16 %v610
    %v627 = vunpack.c.h.b16 %v610
    %v628 = vunpack.c.l.b16 %v611
    %v629 = vunpack.c.h.b16 %v611
    %v630 = vunpack.c.l.b16 %v612
    %v631 = vunpack.c.h.b16 %v612
    %v632 = vunpack.c.l.b16 %v613
    %v633 = vunpack.c.h.b16 %v613
    %v634 = vunpack.c.l.b16 %v614
    %v635 = vunpack.c.h.b16 %v614
    %v636 = vunpack.c.l.b16 %v615
    %v637 = vunpack.c.h.b16 %v615
    %v638 = vunpack.c.l.b16 %v616
    %v639 = vunpack.c.h.b16 %v616
    %v640 = vunpack.c.l.b16 %v617
    %v641 = vunpack.c.h.b16 %v617
    %v642 = vpack.c.b16 %v626, %v626
    %v643 = vpack.c.b16 %v627, %v627
    %v644 = vpack.c.b16 %v628, %v628
    %v645 = vpack.c.b16 %v629, %v629
    %v646 = vpack.c.b16 %v630, %v630
    %v647 = vpack.c.b16 %v631, %v631
    %v648 = vpack.c.b16 %v632, %v632
    %v649 = vpack.c.b16 %v633, %v633
    %v650 = vpack.c.b16 %v634, %v634
    %v651 = vpack.c.b16 %v635, %v635
    %v652 = vpack.c.b16 %v636, %v636
    %v653 = vpack.c.b16 %v637, %v637
    %v654 = vpack.c.b16 %v638, %v638
    %v655 = vpack.c.b16 %v639, %v639
    %v656 = vpack.c.b16 %v640, %v640
    %v657 = vpack.c.b16 %v641, %v641
    %674 = vst [vmem:[#allocation8] sm:$0xf] %v642
    %675 = vst [vmem:[#allocation8 + $0x4] sm:$0xf] %v643
    %676 = vst [vmem:[#allocation8 + $0x8] sm:$0xf] %v644
    %677 = vst [vmem:[#allocation8 + $0xc] sm:$0xf] %v645
    %678 = vst [vmem:[#allocation8 + $0x10] sm:$0xf] %v646
    %679 = vst [vmem:[#allocation8 + $0x14] sm:$0xf] %v647
    %680 = vst [vmem:[#allocation8 + $0x18] sm:$0xf] %v648
    %681 = vst [vmem:[#allocation8 + $0x1c] sm:$0xf] %v649
    %682 = vst [vmem:[#allocation8 + $0x20] sm:$0xf] %v650
    %683 = vst [vmem:[#allocation8 + $0x24] sm:$0xf] %v651
    %684 = vst [vmem:[#allocation8 + $0x28] sm:$0xf] %v652
    %685 = vst [vmem:[#allocation8 + $0x2c] sm:$0xf] %v653
    %686 = vst [vmem:[#allocation8 + $0x30] sm:$0xf] %v654
    %687 = vst [vmem:[#allocation8 + $0x34] sm:$0xf] %v655
    %688 = vst [vmem:[#allocation8 + $0x38] sm:$0xf] %v656
    %689 = vst [vmem:[#allocation8 + $0x3c] sm:$0xf] %v657
    // Predicated region
    $region30: #{tpu_custom_call.1} parent=1 // pred_check
      _
    $region31: #{tpu_custom_call.1} parent=1 // pred_check_branch
      %691 = sbr.rel (0) target = $region33
    $region32: #{tpu_custom_call.1} parent=1 // pred_region
      %s693 = ssub.s32 1024, 1024
      %694 = vsyncadd [#allocation4], %s693
      %s695 = sshll.u32 [#allocation8], 4
      %s696 = int_to_ptr.vmem [resolvable:$true] %s695
      %701 = dma.vmem_to_hbm [thread:$0]  %s696, 1024, %s4, [#allocation4], 64, 64, 4
    $region33: #{tpu_custom_call.1} parent=1 // pred_fallthru
      _
    // Predicated region
    $region34: #{tpu_custom_call.1} parent=1 // pred_check
      _
    $region35: #{tpu_custom_call.1} parent=1 // pred_check_branch
      %703 = sbr.rel (0) target = $region37
    $region36: #{tpu_custom_call.1} parent=1 // pred_region
      %704 = dma.done [#allocation4], 1024
    $region37: #{tpu_custom_call.1} parent=1 // pred_fallthru
      _
    %705 = vsyncpa [#allocation3], 1
    %706 = vsyncpa [#allocation6], 1
    %707 = vsyncpa [#allocation4], 1

</llo_original>
